<compile_context>
chip_gen: v7x
topology: tpu7x:2x2x1
jax: 0.10.0
libtpu: 0.0.40
codegen_flags: <defaults>
</compile_context>

<pallas_src>
import jax
import jax.numpy as jnp
from jax.experimental import pallas as pl
from jax.experimental.pallas import tpu as pltpu

# Sobel filters exactly as in the PyTorch module __init__ (fixed, not learned).
SOBEL_X = ((-1.0, 0.0, 1.0),
           (-2.0, 0.0, 2.0),
           (-1.0, 0.0, 1.0))
SOBEL_Y = ((-1.0, -2.0, -1.0),
           ( 0.0,  0.0,  0.0),
           ( 1.0,  2.0,  1.0))


def _sobel_kernel(sp_ref, out_ref):
    # sp_ref : (1, H+2, W+2) zero-padded channel-sum for one image
    # out_ref: (1, 1, H, W) gradient magnitude
    H = out_ref.shape[2]
    W = out_ref.shape[3]

    sp = sp_ref[0]                      # (H+2, W+2) float32, zero border

    # ---- horizontal (lane) pass, done once and shared by gx and gy ----------
    # SOBEL_X = outer([1,2,1], [-1,0,1]);  SOBEL_Y = outer([-1,0,1], [1,2,1])
    left  = sp[:, 0:W]                  # s[., x-1]
    mid   = sp[:, 1:W + 1]              # s[., x  ]
    right = sp[:, 2:W + 2]              # s[., x+1]
    h_smooth = left + 2.0 * mid + right     # [1, 2, 1]   -> (H+2, W)
    h_diff   = right - left                 # [-1, 0, 1]  -> (H+2, W)

    # ---- vertical (sublane) pass --------------------------------------------
    gx = h_diff[0:H, :] + 2.0 * h_diff[1:H + 1, :] + h_diff[2:H + 2, :]
    gy = h_smooth[2:H + 2, :] - h_smooth[0:H, :]

    # relu is redundant: gx^2 + gy^2 >= 0.  sqrt goes to the EUP slot.
    out_ref[0, 0] = jnp.sqrt(gx * gx + gy * gy)


def grad_image(image_tensor: jax.Array) -> jax.Array:
    """image_tensor: (N, C, H, W) float32 -> (N, 1, H, W) float32."""
    x = image_tensor.astype(jnp.float32)
    N, C, H, W = x.shape

    # Channel reduction + zero pad (padding=1) as a single fused XLA producer:
    # the kernel then streams one (H+2, W+2) plane per image (C x less DMA and
    # C x smaller VMEM blocks than padding / loading the full NCHW tensor).
    s_pad = jnp.pad(jnp.sum(x, axis=1), ((0, 0), (1, 1), (1, 1)))
    Hp, Wp = H + 2, W + 2

    # Rough per-step VMEM footprint: double-buffered input + output blocks plus
    # a handful of (Hp, W)-sized stencil temporaries.  Raise the scoped-VMEM
    # limit only when the default (32 MiB) would be exceeded; cap at 64 MiB so
    # the request is valid on v7x as well as v5e/v6e.
    bytes_per_step = 4 * (2 * Hp * Wp + 2 * H * W + 6 * Hp * Wp)
    compiler_kwargs = dict(dimension_semantics=("parallel",))
    if bytes_per_step > 32 * 1024 * 1024:
        compiler_kwargs["vmem_limit_bytes"] = min(
            int(1.5 * bytes_per_step), 64 * 1024 * 1024)

    return pl.pallas_call(
        _sobel_kernel,
        out_shape=jax.ShapeDtypeStruct((N, 1, H, W), jnp.float32),
        grid_spec=pltpu.PrefetchScalarGridSpec(
            num_scalar_prefetch=0,
            grid=(N,),
            in_specs=[pl.BlockSpec((1, Hp, Wp), lambda b: (b, 0, 0))],
            out_specs=pl.BlockSpec((1, 1, H, W), lambda b: (b, 0, 0, 0)),
        ),
        compiler_params=pltpu.CompilerParams(**compiler_kwargs),
    )(s_pad)


def _reference(image_tensor: jax.Array) -> jax.Array:
    """Pure-JAX reference mirroring torch.nn.functional.conv2d with repeated kernel."""
    x = image_tensor.astype(jnp.float32)
    N, C, H, W = x.shape
    s = jnp.pad(jnp.sum(x, axis=1), ((0, 0), (1, 1), (1, 1)))  # (N, H+2, W+2)
    gx = jnp.zeros((N, H, W), jnp.float32)
    gy = jnp.zeros((N, H, W), jnp.float32)
    for dy in range(3):
        for dx in range(3):
            win = s[:, dy:dy + H, dx:dx + W]
            gx = gx + SOBEL_X[dy][dx] * win
            gy = gy + SOBEL_Y[dy][dx] * win
    return jnp.sqrt(jnp.maximum(gx * gx + gy * gy, 0.0))[:, None]


if __name__ == "__main__":
    key = jax.random.PRNGKey(0)
    x = jax.random.normal(key, (2, 4, 16, 16), dtype=jnp.float32)

    out = jax.block_until_ready(grad_image(x))
    ref = jax.block_until_ready(_reference(x))

    assert out.shape == (2, 1, 16, 16), out.shape
    assert out.dtype == jnp.float32
    assert jnp.allclose(out, ref, atol=1e-4, rtol=1e-4)
    print("KERNEL_OK")
</pallas_src>

<mosaic_0001>
module attributes {stable_mosaic.version = 11 : i64} {
  func.func @_sobel_kernel(%arg0: i32, %arg1: memref<1x18x18xf32, #tpu.memory_space<vmem>>, %arg2: memref<1x1x16x16xf32, #tpu.memory_space<vmem>>) attributes {dimension_semantics = [#tpu.dimension_semantics<parallel>], iteration_bounds = array<i64: 2>, scalar_prefetch = 0 : i64, scratch_operands = 0 : i64, tpu.core_type = #tpu.core_type<tc>, window_params = [{transform_indices = @transform_0, window_bounds = array<i64: 1, 18, 18>}, {transform_indices = @transform_1, window_bounds = array<i64: 1, 1, 16, 16>}]} {
    %c0 = arith.constant 0 : index
    %c0_0 = arith.constant 0 : index
    %c0_1 = arith.constant 0 : index
    %0 = vector.load %arg1[%c0, %c0_0, %c0_1] : memref<1x18x18xf32, #tpu.memory_space<vmem>>, vector<1x18x18xf32>
    %1 = vector.shape_cast %0 : vector<1x18x18xf32> to vector<18x18xf32>
    %2 = vector.extract_strided_slice %1 {offsets = [0, 0], sizes = [18, 16], strides = [1, 1]} : vector<18x18xf32> to vector<18x16xf32>
    %3 = vector.extract_strided_slice %1 {offsets = [0, 1], sizes = [18, 16], strides = [1, 1]} : vector<18x18xf32> to vector<18x16xf32>
    %4 = vector.extract_strided_slice %1 {offsets = [0, 2], sizes = [18, 16], strides = [1, 1]} : vector<18x18xf32> to vector<18x16xf32>
    %cst = arith.constant 2.000000e+00 : f32
    %5 = vector.broadcast %cst : f32 to vector<18x16xf32>
    %6 = arith.mulf %5, %3 : vector<18x16xf32>
    %7 = arith.addf %2, %6 : vector<18x16xf32>
    %8 = arith.addf %7, %4 : vector<18x16xf32>
    %9 = arith.subf %4, %2 : vector<18x16xf32>
    %10 = vector.extract_strided_slice %9 {offsets = [0, 0], sizes = [16, 16], strides = [1, 1]} : vector<18x16xf32> to vector<16x16xf32>
    %11 = vector.extract_strided_slice %9 {offsets = [1, 0], sizes = [16, 16], strides = [1, 1]} : vector<18x16xf32> to vector<16x16xf32>
    %cst_2 = arith.constant 2.000000e+00 : f32
    %12 = vector.broadcast %cst_2 : f32 to vector<16x16xf32>
    %13 = arith.mulf %12, %11 : vector<16x16xf32>
    %14 = arith.addf %10, %13 : vector<16x16xf32>
    %15 = vector.extract_strided_slice %9 {offsets = [2, 0], sizes = [16, 16], strides = [1, 1]} : vector<18x16xf32> to vector<16x16xf32>
    %16 = arith.addf %14, %15 : vector<16x16xf32>
    %17 = vector.extract_strided_slice %8 {offsets = [2, 0], sizes = [16, 16], strides = [1, 1]} : vector<18x16xf32> to vector<16x16xf32>
    %18 = vector.extract_strided_slice %8 {offsets = [0, 0], sizes = [16, 16], strides = [1, 1]} : vector<18x16xf32> to vector<16x16xf32>
    %19 = arith.subf %17, %18 : vector<16x16xf32>
    %20 = arith.mulf %16, %16 : vector<16x16xf32>
    %21 = arith.mulf %19, %19 : vector<16x16xf32>
    %22 = arith.addf %20, %21 : vector<16x16xf32>
    %23 = math.sqrt %22 : vector<16x16xf32>
    %c0_3 = arith.constant 0 : index
    %c0_4 = arith.constant 0 : index
    %c0_5 = arith.constant 0 : index
    %c0_6 = arith.constant 0 : index
    %24 = vector.load %arg2[%c0_3, %c0_4, %c0_5, %c0_6] : memref<1x1x16x16xf32, #tpu.memory_space<vmem>>, vector<1x1x16x16xf32>
    %25 = vector.shape_cast %24 : vector<1x1x16x16xf32> to vector<16x16xf32>
    %26 = vector.shape_cast %23 : vector<16x16xf32> to vector<1x1x16x16xf32>
    tpu.vector_store %arg2[%c0_3, %c0_4, %c0_5, %c0_6], %26 {strides = array<i32>} : memref<1x1x16x16xf32, #tpu.memory_space<vmem>>, vector<1x1x16x16xf32>,
    return
  }
  func.func @transform_0(%arg0: i32) -> (i32, i32, i32) {
    %c0_i32 = arith.constant 0 : i32
    %c0_i32_0 = arith.constant 0 : i32
    %c0_i32_1 = arith.constant 0 : i32
    return %arg0, %c0_i32, %c0_i32_0 : i32, i32, i32
  }
  func.func @transform_1(%arg0: i32) -> (i32, i32, i32, i32) {
    %c0_i32 = arith.constant 0 : i32
    %c0_i32_0 = arith.constant 0 : i32
    %c0_i32_1 = arith.constant 0 : i32
    %c0_i32_2 = arith.constant 0 : i32
    return %arg0, %c0_i32, %c0_i32_0, %c0_i32_1 : i32, i32, i32, i32
  }
}

</mosaic_0001>

<llo_original>
// kernel: tpu_custom_call.1
$region0: #{tpu_custom_call.1}
  #allocation0 [shape = 'u32[]', space=smem, size = 0x4, offset = 0x4, fixed_abs, tag = 'smem constant byte address 0x4 - core index']
  #allocation1 [shape = 'u32[144,128]{1,0:T(1,128)}', space=vmem, size = 0x12000, scoped, tag = 'internal scratch']
  %s0 = inlined_call_operand.vmem [shape: f32[2,18,18], index: 0, kind: input, shape index: {}]
  %s1 = inlined_call_operand.hbm [shape: f32[2,1,16,16], index: 1, kind: output, shape index: {}]
  %s2 = sld [smem:[#allocation0]]
  $region37: #{tpu_custom_call.1} parent=0
    _
  %s4 = ssub.s32 1, %s2
  %s5 = scalar_select 0, %s4, %s2
  $region1: #{tpu_custom_call.1} parent=0
    #allocation2 [shape = 'u8[16384]{0}', space=vmem, size = 0x4000, scoped, tag = 'output window, operand 0']
    #allocation3 [shape = 's32[2]{0}', space=sflag, size = 0x8, scoped, tag = 'scoped memory for tpu_custom_call.1']
    %6 = vsyncpa [#allocation3], 0
    %s7 = scalar_lea.sflag [#allocation3], 1
    %8 = vsyncpa %s7, 0
    loop: start=0, step=1, limit=4
    $region2: #{tpu_custom_call.1} parent=1 // loop_pre_header
      _
    $region3: #{tpu_custom_call.1} parent=1 // loop_header
      %s10 = sphi 0, %s14
      %p11 = scmp.ge.s32.totalorder %s10, 4
      %s20 = sphi 0, %s22
      %s23 = sphi 0, %s20
      %s24 = sphi 0, %s23
      %s40 = sphi 0, %s24
      %s46 = sphi 0, %s48
      %s49 = sphi 0, %s46
      %s50 = sphi 0, %s49
      %s66 = sphi 0, %s50
    $region4: #{tpu_custom_call.1} parent=1 // loop_header_branch
      %13 = sbr.rel (%p11) target = $region8
    $region5: #{tpu_custom_call.1} parent=1 // loop_body
      %s15 = ssub.s32 %s10, 1
      %s16 = ssub.s32 %s10, 2
      %s17 = sadd.s32 %s10, 1
      %s18 = ssub.s32 %s10, %s17
      %p19 = scmp.eq.s32.totalorder %s18, 0
      %s21 = sadd.s32 %s20, 1
      %s22 = scalar_select %p19, %s20, %s21
      %p25 = pneg %p19
      %p26 = scmp.eq.s32.totalorder %s10, 1
      %p27 = por %p25, %p26
      %p28 = scmp.ne.s32.totalorder %s20, %s23
      %p29 = scmp.eq.s32.totalorder %s10, 0
      %p30 = por %p28, %p29
      %p31 = scmp.ne.s32.totalorder %s20, %s23
      %p32 = scmp.eq.s32.totalorder %s15, 1
      %p33 = por %p31, %p32
      %p34 = scmp.ne.s32.totalorder %s23, %s24
      %p35 = scmp.eq.s32.totalorder %s15, 0
      %p36 = por %p34, %p35
      %p37 = scmp.ne.s32.totalorder %s23, %s24
      %p38 = scmp.eq.s32.totalorder %s16, 1
      %p39 = por %p37, %p38
      %p41 = scmp.ne.s32.totalorder %s24, %s40
      %p42 = scmp.eq.s32.totalorder %s16, 0
      %p43 = por %p41, %p42
      %s44 = ssub.s32 %s10, %s17
      %p45 = scmp.eq.s32.totalorder %s44, 0
      %s47 = sadd.s32 %s46, 1
      %s48 = scalar_select %p45, %s46, %s47
      %p51 = pneg %p45
      %p52 = scmp.eq.s32.totalorder %s10, 1
      %p53 = por %p51, %p52
      %p54 = scmp.ne.s32.totalorder %s46, %s49
      %p55 = scmp.eq.s32.totalorder %s10, 0
      %p56 = por %p54, %p55
      %p57 = scmp.ne.s32.totalorder %s46, %s49
      %p58 = scmp.eq.s32.totalorder %s15, 1
      %p59 = por %p57, %p58
      %p60 = scmp.ne.s32.totalorder %s49, %s50
      %p61 = scmp.eq.s32.totalorder %s15, 0
      %p62 = por %p60, %p61
      %p63 = scmp.ne.s32.totalorder %s49, %s50
      %p64 = scmp.eq.s32.totalorder %s16, 1
      %p65 = por %p63, %p64
      %p67 = scmp.ne.s32.totalorder %s50, %s66
      %p68 = scmp.eq.s32.totalorder %s16, 0
      %p69 = por %p67, %p68
      %p70 = scmp.le.s32.totalorder 1, %s10
      %p71 = scmp.lt.s32.totalorder %s10, 3
      %p72 = pnand %p70, %p71
      %p73 = pneg %p72
      // Predicated region
      $region9: #{tpu_custom_call.1} parent=5 // pred_check
        _
      $region10: #{tpu_custom_call.1} parent=5 // pred_check_branch
        %75 = sbr.rel (%p72) target = $region12
      $region11: #{tpu_custom_call.1} parent=5 // pred_region
        %s76 = ssub.s32 %s10, 1
      $region12: #{tpu_custom_call.1} parent=5 // pred_fallthru
        _
      %p77 = scmp.lt.s32.totalorder %s10, 2
      // Predicated region
      $region13: #{tpu_custom_call.1} parent=5 // pred_check
        %p78 = pneg %p77
      $region14: #{tpu_custom_call.1} parent=5 // pred_check_branch
        %80 = sbr.rel (%p78) target = $region16
      $region15: #{tpu_custom_call.1} parent=5 // pred_region
        // Predicated region
        $region17: #{tpu_custom_call.1} parent=15 // pred_check
          %p81 = pneg %p30
        $region18: #{tpu_custom_call.1} parent=15 // pred_check_branch
          %83 = sbr.rel (%p81) target = $region20
        $region19: #{tpu_custom_call.1} parent=15 // pred_region
          %p84 = scmp.lt.s32.totalorder %s10, 1
          %s85 = scalar_select %p84, %s10, 1
          %s86 = smul.addr %s85, 3
          %s87 = smul.addr %s86, 8
          %s88 = scalar_lea.vmem %s0, %s87
        $region20: #{tpu_custom_call.1} parent=15 // pred_fallthru
          _
      $region16: #{tpu_custom_call.1} parent=5 // pred_fallthru
        _
      %p89 = scmp.le.s32.totalorder 1, %s10
      %p90 = scmp.lt.s32.totalorder %s10, 3
      %p91 = pnand %p89, %p90
      %p92 = pneg %p91
      // Predicated region
      $region21: #{tpu_custom_call.1} parent=5 // pred_check
        _
      $region22: #{tpu_custom_call.1} parent=5 // pred_check_branch
        %94 = sbr.rel (%p91) target = $region24
      $region23: #{tpu_custom_call.1} parent=5 // pred_region
        %s95 = ssub.s32 %s10, 1
        %p96 = scmp.lt.s32.totalorder %s15, 1
        %s97 = scalar_select %p96, %s15, 1
        %s98 = smul.addr %s97, 3
        %s99 = smul.addr %s98, 8
        %s100 = scalar_lea.vmem %s0, %s99
        %p101 = pneg %p36
        %p102 = pneg %p33
        %p103 = pneg %p62
        %p104 = pneg %p59
        %s105 = sand.u32 %s49, 1
        %s106 = scalar_lea.sflag [#allocation3], %s105
        %s107 = sand.u32 %s49, 1
        %s108 = smul.addr %s107, 16
        %s109 = scalar_lea.vmem [#allocation2], %s108
        %p110 = scmp.lt.s32.totalorder %s15, 1
        %s111 = scalar_select %p110, %s15, 1
        %s112 = smul.addr %s111, 3
        %s113 = smul.addr %s112, 8
        %s114 = scalar_lea.vmem %s0, %s113
        %v115 = vld [vmem:[%s114] sm:$0xff]
        %v116 = vld [vmem:[%s114 + $0x8] sm:$0xff]
        %v117 = vld [vmem:[%s114 + $0x10] sm:$0x3]
        %v118 = vmul.f32 %v115, 2.0
        %v119 = vmul.f32 %v116, 2.0
        %v120 = vmul.f32 %v117, 2.0
        %124 = vrot.lane.b32.xlu0 %v118, 127
        %v125 = vpop.permute.xlu0 %124
        %126 = vrot.lane.b32.xlu0 %v119, 127
        %v127 = vpop.permute.xlu0 %126
        %128 = vrot.lane.b32.xlu0 %v120, 127
        %v129 = vpop.permute.xlu0 %128
        %v133 = vadd.f32 %v115, %v125
        %v134 = vadd.f32 %v116, %v127
        %v135 = vadd.f32 %v117, %v129
        %139 = vrot.lane.b32.xlu0 %v115, 126
        %v140 = vpop.permute.xlu0 %139
        %141 = vrot.lane.b32.xlu0 %v116, 126
        %v142 = vpop.permute.xlu0 %141
        %143 = vrot.lane.b32.xlu0 %v117, 126
        %v144 = vpop.permute.xlu0 %143
        %v148 = vadd.f32 %v133, %v140
        %v149 = vadd.f32 %v134, %v142
        %v150 = vadd.f32 %v135, %v144
        %151 = vrot.lane.b32.xlu0 %v115, 2
        %v152 = vpop.permute.xlu0 %151
        %153 = vrot.lane.b32.xlu0 %v116, 2
        %v154 = vpop.permute.xlu0 %153
        %155 = vrot.lane.b32.xlu0 %v117, 2
        %v156 = vpop.permute.xlu0 %155
        %v160 = vsub.f32 %v115, %v152
        %v161 = vsub.f32 %v116, %v154
        %v162 = vsub.f32 %v117, %v156
        %v163 = vmul.f32 %v160, 2.0
        %v164 = vmul.f32 %v161, 2.0
        %v165 = vmul.f32 %v162, 2.0
        %vm169 = vcmask 1046528
        %v170 = vrot.slane %v163, 1
        %v171 = vrot.slane %v164, 1
        %v172 = vsel %vm169, %v170, %v171
        %v173 = vrot.slane %v165, 1
        %v174 = vsel %vm169, %v171, %v173
        %v177 = vadd.f32 %v160, %v172
        %v178 = vadd.f32 %v161, %v174
        %vm182 = vcmask 1045504
        %v183 = vrot.slane %v160, 2
        %v184 = vrot.slane %v161, 2
        %v185 = vsel %vm182, %v183, %v184
        %v186 = vrot.slane %v162, 2
        %v187 = vsel %vm182, %v184, %v186
        %v190 = vadd.f32 %v177, %v185
        %v191 = vadd.f32 %v178, %v187
        %vm194 = vcmask 1041408
        %v195 = vrot.slane %v148, 6
        %v196 = vrot.slane %v149, 6
        %v197 = vsel %vm194, %v195, %v196
        %v201 = vsub.f32 %v148, %v195
        %v202 = vsub.f32 %v149, %v197
        %v203 = vsub.f32 %v150, %v196
        %v204 = vmul.f32 %v190, %v190
        %v205 = vmul.f32 %v191, %v191
        %v206 = vmul.f32 %v201, %v201
        %v207 = vmul.f32 %v202, %v202
        %v208 = vmul.f32 %v203, %v203
        %v212 = vrot.slane %v206, 2
        %v213 = vrot.slane %v207, 2
        %v214 = vsel %vm182, %v212, %v213
        %v215 = vrot.slane %v208, 2
        %v216 = vsel %vm182, %v213, %v215
        %217 = vrot.lane.b32.xlu0 %v214, 2
        %v218 = vpop.permute.xlu0 %217
        %219 = vrot.lane.b32.xlu0 %v216, 2
        %v220 = vpop.permute.xlu0 %219
        %v223 = vadd.f32 %v204, %v218
        %v224 = vadd.f32 %v205, %v220
        %v225 = vrsqrt.pop %v223
        %v226 = vmul.f32 %v223, %v225
        %vm227 = vcmp.eq.f32.partialorder %v223, inf
        %v228 = vsel %vm227, %v223, %v226
        %vm229 = vcmp.eq.f32.partialorder %v223, 0.0
        %v230 = vand.u32 %v223, 2147483648
        %v231 = vsel %vm229, %v230, %v228
        %v232 = vrsqrt.pop %v224
        %v233 = vmul.f32 %v224, %v232
        %vm234 = vcmp.eq.f32.partialorder %v224, inf
        %v235 = vsel %vm234, %v224, %v233
        %vm236 = vcmp.eq.f32.partialorder %v224, 0.0
        %v237 = vand.u32 %v224, 2147483648
        %v238 = vsel %vm236, %v237, %v235
        %241 = vrot.lane.b32.xlu0 %v231, 126
        %v242 = vpop.permute.xlu0 %241
        %243 = vrot.lane.b32.xlu0 %v238, 126
        %v244 = vpop.permute.xlu0 %243
        %vm247 = vcmask 130048
        %248 = vst.msk [vmem:[%s109] sm:$0xff] %vm247, %v242
        %249 = vst.msk [vmem:[%s109 + $0x8] sm:$0xff] %vm247, %v244
        %s250 = sand.u32 %s49, 1
        %s251 = scalar_lea.sflag [#allocation3], %s250
        %s252 = sand.u32 %s49, 1
        %s253 = smul.addr %s252, 16
        %s254 = scalar_lea.vmem [#allocation2], %s253
        // Predicated region
        $region25: #{tpu_custom_call.1} parent=23 // pred_check
          %p255 = pneg %p59
        $region26: #{tpu_custom_call.1} parent=23 // pred_check_branch
          %257 = sbr.rel (%p255) target = $region28
        $region27: #{tpu_custom_call.1} parent=23 // pred_region
          %s259 = ssub.s32 256, 256
          %260 = vsyncadd %s251, %s259
          %s261 = smul.addr %s15, 2
          %s262 = smul.addr %s261, 128
          %s263 = scalar_lea.hbm %s1, %s262
          %s264 = sshll.u32 %s254, 4
          %s265 = int_to_ptr.vmem [resolvable:$true] %s264
          %270 = dma.vmem_to_hbm [thread:$0]  %s265, 256, %s263, %s251, 128, 128, 8
        $region28: #{tpu_custom_call.1} parent=23 // pred_fallthru
          _
      $region24: #{tpu_custom_call.1} parent=5 // pred_fallthru
        _
      %p271 = scmp.le.s32.totalorder 2, %s10
      // Predicated region
      $region29: #{tpu_custom_call.1} parent=5 // pred_check
        %p272 = pneg %p271
      $region30: #{tpu_custom_call.1} parent=5 // pred_check_branch
        %274 = sbr.rel (%p272) target = $region32
      $region31: #{tpu_custom_call.1} parent=5 // pred_region
        %s275 = ssub.s32 %s10, 2
        // Predicated region
        $region33: #{tpu_custom_call.1} parent=31 // pred_check
          %p276 = pneg %p65
        $region34: #{tpu_custom_call.1} parent=31 // pred_check_branch
          %278 = sbr.rel (%p276) target = $region36
        $region35: #{tpu_custom_call.1} parent=31 // pred_region
          %s279 = sand.u32 %s50, 1
          %s280 = scalar_lea.sflag [#allocation3], %s279
          %s281 = sand.u32 %s50, 1
          %s282 = smul.addr %s281, 16
          %s283 = scalar_lea.vmem [#allocation2], %s282
          %284 = dma.done %s280, 256
        $region36: #{tpu_custom_call.1} parent=31 // pred_fallthru
          _
      $region32: #{tpu_custom_call.1} parent=5 // pred_fallthru
        _
    $region6: #{tpu_custom_call.1} parent=1 // loop_footer
      %s14 = sadd.s32 1, %s10
    $region7: #{tpu_custom_call.1} parent=1 // loop_footer_branch
      %9 = sbr.rel target = $region3
    $region8: #{tpu_custom_call.1} parent=1 // loop_exit
      _
    %285 = vsyncpa [#allocation3], 1
    %s286 = scalar_lea.sflag [#allocation3], 1
    %287 = vsyncpa %s286, 1

</llo_original>
